<compile_context>
chip_gen: v7x
topology: tpu7x:2x2x1
jax: 0.10.0
libtpu: 0.0.40
codegen_flags: <defaults>
</compile_context>

<pallas_src>
import functools

import jax
import jax.numpy as jnp
from jax.experimental import pallas as pl
from jax.experimental.pallas import tpu as pltpu

_LANES = 128
_SUBLANES = 8


def _focal_loss_kernel(preds_ref, labels_ref, out_ref, *, alpha_vec, gamma,
                       n_rows, tm):
    """One grid step: tm*128 rows, all C classes, emits an (8,128) partial sum.

    preds_ref : (C, tm, 128)  input logits (native dtype)
    labels_ref: (tm, 128)     int32 labels
    out_ref   : (1, 8, 128)   f32 partial sums for this block
    """
    num_classes = preds_ref.shape[0]
    labels = labels_ref[...]                                   # (tm, 128) i32

    # Per-class dense (tm, 128) slabs; C is tiny & static -> fully unrolled.
    rows = [preds_ref[c].astype(jnp.float32) for c in range(num_classes)]

    # Unrolled max over classes (pure VPU, no cross-lane XLU reduce).
    m = rows[0]
    for c in range(1, num_classes):
        m = jnp.maximum(m, rows[c])

    # Unrolled sum-of-exp + one-hot selects at the label class.
    sumexp = jnp.zeros_like(m)
    shifted_t = jnp.zeros_like(m)
    exp_t = jnp.zeros_like(m)
    alpha_t = jnp.zeros_like(m)
    for c in range(num_classes):
        shifted_c = rows[c] - m
        e_c = jnp.exp(shifted_c)
        sumexp = sumexp + e_c
        is_c = labels == c
        shifted_t = jnp.where(is_c, shifted_c, shifted_t)
        exp_t = jnp.where(is_c, e_c, exp_t)
        alpha_t = jnp.where(is_c, jnp.float32(alpha_vec[c]), alpha_t)

    # logp_t computed directly (no full logp block); p_t reuses exp(shifted).
    logp_t = shifted_t - jnp.log(sumexp)                       # (tm, 128)
    p_t = exp_t / sumexp                                       # no 2nd exp

    one_minus = 1.0 - p_t
    if isinstance(gamma, int):
        mod = one_minus ** gamma                               # integer_pow
    else:
        mod = jnp.power(one_minus, jnp.float32(gamma))

    loss = -alpha_t * mod * logp_t                             # (tm, 128)

    # Mask padded rows, reduce to an (8, 128) partial slab (pure vreg adds).
    ridx = (pl.program_id(0) * (tm * _LANES)
            + jax.lax.broadcasted_iota(jnp.int32, (tm, _LANES), 0) * _LANES
            + jax.lax.broadcasted_iota(jnp.int32, (tm, _LANES), 1))
    loss = jnp.where(ridx < n_rows, loss, 0.0)
    out_ref[0] = jnp.sum(loss.reshape(tm // _SUBLANES, _SUBLANES, _LANES),
                         axis=0)


def _round_up(x, m):
    return ((x + m - 1) // m) * m


def _cdiv(a, b):
    return -(-a // b)


def _alpha_values(alpha, num_classes):
    """Static per-class alpha values, exactly like the PyTorch module."""
    if isinstance(alpha, (list, tuple)):
        assert len(alpha) == num_classes
        return tuple(float(a) for a in alpha)
    alpha = float(alpha)
    assert alpha < 1
    return (alpha,) + (1.0 - alpha,) * (num_classes - 1)


def focal_loss(preds, labels, *, alpha=0.25, gamma=2, num_classes=3,
               size_average=True, row_tile=16384):
    """Pallas implementation of focal_loss.forward (see PyTorch reference)."""
    C = preds.shape[-1]
    assert C == num_classes, (C, num_classes)

    gamma_static = int(gamma) if float(gamma).is_integer() else float(gamma)
    alpha_vec = _alpha_values(alpha, num_classes)

    preds2 = preds.reshape(-1, C)
    labels1 = labels.reshape(-1).astype(jnp.int32)
    n_rows = preds2.shape[0]

    # Rows are laid onto (sublane, lane): a tile is tm*128 rows, tm % 8 == 0.
    min_rows = _SUBLANES * _LANES                       # 1024 rows minimum
    tile_rows = min(row_tile, _round_up(n_rows, min_rows))
    tile_rows = max(min_rows, (tile_rows // min_rows) * min_rows)
    # Keep >= 2 grid steps on large inputs so both v7x TensorCores get work.
    if n_rows > 2 * min_rows:
        tile_rows = min(tile_rows, _round_up(_cdiv(n_rows, 2), min_rows))
    n_pad = _round_up(n_rows, tile_rows)
    tm = tile_rows // _LANES
    n_blocks = n_pad // tile_rows

    if n_pad != n_rows:
        preds2 = jnp.pad(preds2, ((0, n_pad - n_rows), (0, 0)))
        labels1 = jnp.pad(labels1, ((0, n_pad - n_rows),))

    # Lane/sublane-dense relayout (single cheap XLA transpose pass over HBM).
    preds_t = preds2.T.reshape(C, n_pad // _LANES, _LANES)      # (C, M, 128)
    labels_t = labels1.reshape(n_pad // _LANES, _LANES)         # (M, 128)

    itemsize = jnp.dtype(preds_t.dtype).itemsize
    cost = pl.CostEstimate(
        flops=20 * n_pad * C,
        transcendentals=n_pad * (C + 1),            # exp per class + log per row
        bytes_accessed=(n_pad * C * itemsize + n_pad * 4
                        + n_blocks * _SUBLANES * _LANES * 4),
    )

    partials = pl.pallas_call(
        functools.partial(_focal_loss_kernel, alpha_vec=alpha_vec,
                          gamma=gamma_static, n_rows=n_rows, tm=tm),
        out_shape=jax.ShapeDtypeStruct((n_blocks, _SUBLANES, _LANES),
                                       jnp.float32),
        grid_spec=pltpu.PrefetchScalarGridSpec(
            num_scalar_prefetch=0,
            grid=(n_blocks,),
            in_specs=[
                pl.BlockSpec((C, tm, _LANES), lambda i: (0, i, 0)),  # preds
                pl.BlockSpec((tm, _LANES), lambda i: (i, 0)),        # labels
            ],
            out_specs=pl.BlockSpec((1, _SUBLANES, _LANES),
                                   lambda i: (i, 0, 0)),
        ),
        compiler_params=pltpu.CompilerParams(
            dimension_semantics=("parallel",),       # row blocks independent
        ),
        cost_estimate=cost,
    )(preds_t, labels_t)

    total = jnp.sum(partials)                         # tiny (n_blocks,8,128)
    if size_average:
        return total / n_rows
    return total


def _reference(preds, labels, *, alpha=0.25, gamma=2, num_classes=3,
               size_average=True):
    """Pure-JAX reference mirroring the PyTorch module exactly."""
    gamma_static = int(gamma) if float(gamma).is_integer() else float(gamma)
    alpha_vec = jnp.asarray(_alpha_values(alpha, num_classes),
                            dtype=jnp.float32)

    labels_f = labels.reshape(-1).astype(jnp.int32)
    preds_f = preds.reshape(-1, preds.shape[-1]).astype(jnp.float32)

    logp = jax.nn.log_softmax(preds_f, axis=1)
    p = jnp.exp(logp)
    p_t = jnp.take_along_axis(p, labels_f[:, None], axis=1)[:, 0]
    logp_t = jnp.take_along_axis(logp, labels_f[:, None], axis=1)[:, 0]
    a_t = alpha_vec[labels_f]

    loss = -a_t * ((1.0 - p_t) ** gamma_static) * logp_t
    return jnp.mean(loss) if size_average else jnp.sum(loss)


if __name__ == "__main__":
    key = jax.random.PRNGKey(0)

    # Shapes from the spec: preds [B=3, S=4, C=5], labels [3, 4].
    label = jnp.array([[0, 3, 4, 1], [2, 1, 0, 0], [0, 0, 4, 1]],
                      dtype=jnp.int32)
    y_pred = jax.random.normal(key, (3, 4, 5), dtype=jnp.float32)

    loss = focal_loss(y_pred, label, alpha=0.75, gamma=2, num_classes=5)
    loss = jax.block_until_ready(loss)

    ref = _reference(y_pred, label, alpha=0.75, gamma=2, num_classes=5)
    assert jnp.allclose(loss, ref, atol=1e-5, rtol=1e-5), (loss, ref)

    # Also exercise sum-reduction and a larger, unevenly padded shape.
    key2 = jax.random.PRNGKey(1)
    big_labels = jax.random.randint(key2, (7, 37), 0, 5)
    big_preds = jax.random.normal(key2, (7, 37, 5), dtype=jnp.float32)
    got = focal_loss(big_preds, big_labels, alpha=0.25, gamma=2,
                     num_classes=5, size_average=False)
    got = jax.block_until_ready(got)
    want = _reference(big_preds, big_labels, alpha=0.25, gamma=2,
                      num_classes=5, size_average=False)
    assert jnp.allclose(got, want, atol=1e-4, rtol=1e-5), (got, want)

    print("KERNEL_OK")
</pallas_src>

<mosaic_0001>
module attributes {stable_mosaic.version = 11 : i64} {
  func.func @_focal_loss_kernel(%arg0: i32, %arg1: memref<5x8x128xf32, #tpu.memory_space<vmem>>, %arg2: memref<8x128xi32, #tpu.memory_space<vmem>>, %arg3: memref<1x8x128xf32, #tpu.memory_space<vmem>>) attributes {dimension_semantics = [#tpu.dimension_semantics<parallel>], iteration_bounds = array<i64: 1>, scalar_prefetch = 0 : i64, scratch_operands = 0 : i64, tpu.core_type = #tpu.core_type<tc>, window_params = [{transform_indices = @transform_0, window_bounds = array<i64: 5, 8, 128>}, {transform_indices = @transform_1, window_bounds = array<i64: 8, 128>}, {transform_indices = @transform_2, window_bounds = array<i64: 1, 8, 128>}]} {
    %c0 = arith.constant 0 : index
    %c0_0 = arith.constant 0 : index
    %0 = vector.load %arg2[%c0, %c0_0] : memref<8x128xi32, #tpu.memory_space<vmem>>, vector<8x128xi32>
    %c0_1 = arith.constant 0 : index
    %c0_2 = arith.constant 0 : index
    %c0_3 = arith.constant 0 : index
    %1 = vector.load %arg1[%c0_1, %c0_2, %c0_3] : memref<5x8x128xf32, #tpu.memory_space<vmem>>, vector<1x8x128xf32>
    %2 = vector.shape_cast %1 : vector<1x8x128xf32> to vector<8x128xf32>
    %c1 = arith.constant 1 : index
    %c0_4 = arith.constant 0 : index
    %c0_5 = arith.constant 0 : index
    %3 = vector.load %arg1[%c1, %c0_4, %c0_5] : memref<5x8x128xf32, #tpu.memory_space<vmem>>, vector<1x8x128xf32>
    %4 = vector.shape_cast %3 : vector<1x8x128xf32> to vector<8x128xf32>
    %c2 = arith.constant 2 : index
    %c0_6 = arith.constant 0 : index
    %c0_7 = arith.constant 0 : index
    %5 = vector.load %arg1[%c2, %c0_6, %c0_7] : memref<5x8x128xf32, #tpu.memory_space<vmem>>, vector<1x8x128xf32>
    %6 = vector.shape_cast %5 : vector<1x8x128xf32> to vector<8x128xf32>
    %c3 = arith.constant 3 : index
    %c0_8 = arith.constant 0 : index
    %c0_9 = arith.constant 0 : index
    %7 = vector.load %arg1[%c3, %c0_8, %c0_9] : memref<5x8x128xf32, #tpu.memory_space<vmem>>, vector<1x8x128xf32>
    %8 = vector.shape_cast %7 : vector<1x8x128xf32> to vector<8x128xf32>
    %c4 = arith.constant 4 : index
    %c0_10 = arith.constant 0 : index
    %c0_11 = arith.constant 0 : index
    %9 = vector.load %arg1[%c4, %c0_10, %c0_11] : memref<5x8x128xf32, #tpu.memory_space<vmem>>, vector<1x8x128xf32>
    %10 = vector.shape_cast %9 : vector<1x8x128xf32> to vector<8x128xf32>
    %11 = arith.maximumf %2, %4 : vector<8x128xf32>
    %12 = arith.maximumf %11, %6 : vector<8x128xf32>
    %13 = arith.maximumf %12, %8 : vector<8x128xf32>
    %14 = arith.maximumf %13, %10 : vector<8x128xf32>
    %cst = arith.constant 0.000000e+00 : f32
    %15 = vector.broadcast %cst : f32 to vector<8x128xf32>
    %cst_12 = arith.constant 0.000000e+00 : f32
    %16 = vector.broadcast %cst_12 : f32 to vector<8x128xf32>
    %cst_13 = arith.constant 0.000000e+00 : f32
    %17 = vector.broadcast %cst_13 : f32 to vector<8x128xf32>
    %cst_14 = arith.constant 0.000000e+00 : f32
    %18 = vector.broadcast %cst_14 : f32 to vector<8x128xf32>
    %19 = arith.subf %2, %14 : vector<8x128xf32>
    %20 = math.exp %19 : vector<8x128xf32>
    %21 = arith.addf %15, %20 : vector<8x128xf32>
    %c0_i32 = arith.constant 0 : i32
    %22 = vector.broadcast %c0_i32 : i32 to vector<8x128xi32>
    %23 = arith.cmpi eq, %0, %22 : vector<8x128xi32>
    %24 = arith.select %23, %19, %16 : vector<8x128xi1>, vector<8x128xf32>
    %25 = arith.select %23, %20, %17 : vector<8x128xi1>, vector<8x128xf32>
    %cst_15 = arith.constant 7.500000e-01 : f32
    %26 = vector.broadcast %cst_15 : f32 to vector<8x128xf32>
    %27 = arith.select %23, %26, %18 : vector<8x128xi1>, vector<8x128xf32>
    %28 = arith.subf %4, %14 : vector<8x128xf32>
    %29 = math.exp %28 : vector<8x128xf32>
    %30 = arith.addf %21, %29 : vector<8x128xf32>
    %c1_i32 = arith.constant 1 : i32
    %31 = vector.broadcast %c1_i32 : i32 to vector<8x128xi32>
    %32 = arith.cmpi eq, %0, %31 : vector<8x128xi32>
    %33 = arith.select %32, %28, %24 : vector<8x128xi1>, vector<8x128xf32>
    %34 = arith.select %32, %29, %25 : vector<8x128xi1>, vector<8x128xf32>
    %cst_16 = arith.constant 2.500000e-01 : f32
    %35 = vector.broadcast %cst_16 : f32 to vector<8x128xf32>
    %36 = arith.select %32, %35, %27 : vector<8x128xi1>, vector<8x128xf32>
    %37 = arith.subf %6, %14 : vector<8x128xf32>
    %38 = math.exp %37 : vector<8x128xf32>
    %39 = arith.addf %30, %38 : vector<8x128xf32>
    %c2_i32 = arith.constant 2 : i32
    %40 = vector.broadcast %c2_i32 : i32 to vector<8x128xi32>
    %41 = arith.cmpi eq, %0, %40 : vector<8x128xi32>
    %42 = arith.select %41, %37, %33 : vector<8x128xi1>, vector<8x128xf32>
    %43 = arith.select %41, %38, %34 : vector<8x128xi1>, vector<8x128xf32>
    %cst_17 = arith.constant 2.500000e-01 : f32
    %44 = vector.broadcast %cst_17 : f32 to vector<8x128xf32>
    %45 = arith.select %41, %44, %36 : vector<8x128xi1>, vector<8x128xf32>
    %46 = arith.subf %8, %14 : vector<8x128xf32>
    %47 = math.exp %46 : vector<8x128xf32>
    %48 = arith.addf %39, %47 : vector<8x128xf32>
    %c3_i32 = arith.constant 3 : i32
    %49 = vector.broadcast %c3_i32 : i32 to vector<8x128xi32>
    %50 = arith.cmpi eq, %0, %49 : vector<8x128xi32>
    %51 = arith.select %50, %46, %42 : vector<8x128xi1>, vector<8x128xf32>
    %52 = arith.select %50, %47, %43 : vector<8x128xi1>, vector<8x128xf32>
    %cst_18 = arith.constant 2.500000e-01 : f32
    %53 = vector.broadcast %cst_18 : f32 to vector<8x128xf32>
    %54 = arith.select %50, %53, %45 : vector<8x128xi1>, vector<8x128xf32>
    %55 = arith.subf %10, %14 : vector<8x128xf32>
    %56 = math.exp %55 : vector<8x128xf32>
    %57 = arith.addf %48, %56 : vector<8x128xf32>
    %c4_i32 = arith.constant 4 : i32
    %58 = vector.broadcast %c4_i32 : i32 to vector<8x128xi32>
    %59 = arith.cmpi eq, %0, %58 : vector<8x128xi32>
    %60 = arith.select %59, %55, %51 : vector<8x128xi1>, vector<8x128xf32>
    %61 = arith.select %59, %56, %52 : vector<8x128xi1>, vector<8x128xf32>
    %cst_19 = arith.constant 2.500000e-01 : f32
    %62 = vector.broadcast %cst_19 : f32 to vector<8x128xf32>
    %63 = arith.select %59, %62, %54 : vector<8x128xi1>, vector<8x128xf32>
    %64 = math.log %57 : vector<8x128xf32>
    %65 = arith.subf %60, %64 : vector<8x128xf32>
    %66 = arith.divf %61, %57 : vector<8x128xf32>
    %cst_20 = arith.constant 1.000000e+00 : f32
    %67 = vector.broadcast %cst_20 : f32 to vector<8x128xf32>
    %68 = arith.subf %67, %66 : vector<8x128xf32>
    %69 = arith.mulf %68, %68 : vector<8x128xf32>
    %cst_21 = arith.constant 0.000000e+00 : f32
    %70 = vector.broadcast %cst_21 : f32 to vector<8x128xf32>
    %71 = arith.subf %70, %63 : vector<8x128xf32>
    %72 = arith.mulf %71, %69 : vector<8x128xf32>
    %73 = arith.mulf %72, %65 : vector<8x128xf32>
    %c1024_i32 = arith.constant 1024 : i32
    %74 = arith.muli %arg0, %c1024_i32 : i32
    %75 = tpu.iota {dimensions = array<i32: 0>} : vector<8x128xi32>
    %c128_i32 = arith.constant 128 : i32
    %76 = vector.broadcast %c128_i32 : i32 to vector<8x128xi32>
    %77 = arith.muli %75, %76 : vector<8x128xi32>
    %78 = vector.broadcast %74 : i32 to vector<8x128xi32>
    %79 = arith.addi %78, %77 : vector<8x128xi32>
    %80 = tpu.iota {dimensions = array<i32: 1>} : vector<8x128xi32>
    %81 = arith.addi %79, %80 : vector<8x128xi32>
    %c12_i32 = arith.constant 12 : i32
    %82 = vector.broadcast %c12_i32 : i32 to vector<8x128xi32>
    %83 = arith.cmpi slt, %81, %82 : vector<8x128xi32>
    %cst_22 = arith.constant 0.000000e+00 : f32
    %84 = vector.broadcast %cst_22 : f32 to vector<8x128xf32>
    %85 = arith.select %83, %73, %84 : vector<8x128xi1>, vector<8x128xf32>
    %86 = vector.shape_cast %85 : vector<8x128xf32> to vector<1x8x128xf32>
    %cst_23 = arith.constant dense<0.000000e+00> : vector<8x128xf32>
    %87 = vector.multi_reduction <add>, %86, %cst_23 [0] : vector<1x8x128xf32> to vector<8x128xf32>
    %c0_24 = arith.constant 0 : index
    %c0_25 = arith.constant 0 : index
    %c0_26 = arith.constant 0 : index
    %88 = vector.load %arg3[%c0_24, %c0_25, %c0_26] : memref<1x8x128xf32, #tpu.memory_space<vmem>>, vector<1x8x128xf32>
    %89 = vector.shape_cast %88 : vector<1x8x128xf32> to vector<8x128xf32>
    %90 = vector.shape_cast %87 : vector<8x128xf32> to vector<1x8x128xf32>
    tpu.vector_store %arg3[%c0_24, %c0_25, %c0_26], %90 {strides = array<i32>} : memref<1x8x128xf32, #tpu.memory_space<vmem>>, vector<1x8x128xf32>,
    return
  }
  func.func @transform_0(%arg0: i32) -> (i32, i32, i32) {
    %c0_i32 = arith.constant 0 : i32
    %c0_i32_0 = arith.constant 0 : i32
    %c0_i32_1 = arith.constant 0 : i32
    return %c0_i32, %arg0, %c0_i32_0 : i32, i32, i32
  }
  func.func @transform_1(%arg0: i32) -> (i32, i32) {
    %c0_i32 = arith.constant 0 : i32
    %c0_i32_0 = arith.constant 0 : i32
    return %arg0, %c0_i32 : i32, i32
  }
  func.func @transform_2(%arg0: i32) -> (i32, i32, i32) {
    %c0_i32 = arith.constant 0 : i32
    %c0_i32_0 = arith.constant 0 : i32
    %c0_i32_1 = arith.constant 0 : i32
    return %arg0, %c0_i32, %c0_i32_0 : i32, i32, i32
  }
}

</mosaic_0001>

<llo_original>
// kernel: tpu_custom_call.1
$region0: #{tpu_custom_call.1}
  #allocation0 [shape = 'u32[]', space=smem, size = 0x4, offset = 0x4, fixed_abs, tag = 'smem constant byte address 0x4 - core index']
  #allocation1 [shape = 'u32[144,128]{1,0:T(1,128)}', space=vmem, size = 0x12000, scoped, tag = 'internal scratch']
  %s0 = inlined_call_operand.hbm [shape: f32[5,8,128], index: 0, kind: input, shape index: {}]
  %s1 = inlined_call_operand.hbm [shape: s32[8,128], index: 1, kind: input, shape index: {}]
  %s2 = inlined_call_operand.hbm [shape: f32[1,8,128], index: 2, kind: output, shape index: {}]
  %s3 = sld [smem:[#allocation0]]
  $region26: #{tpu_custom_call.1} parent=0
    _
  %s5 = ssub.s32 1, %s3
  %s6 = scalar_select 0, %s5, %s3
  $region1: #{tpu_custom_call.1} parent=0
    #allocation2 [shape = 'u8[20480]{0}', space=vmem, size = 0x5000, scoped, tag = 'input window, operand 0, single buffered']
    #allocation3 [shape = 's32[1]{0}', space=sflag, size = 0x4, scoped, tag = 'scoped memory for tpu_custom_call.1']
    #allocation4 [shape = 's32[1]{0}', space=sflag, size = 0x4, scoped, tag = 'scoped memory for tpu_custom_call.1']
    #allocation5 [shape = 'u8[4096]{0}', space=vmem, size = 0x1000, scoped, tag = 'input window, operand 1, single buffered']
    #allocation6 [shape = 's32[1]{0}', space=sflag, size = 0x4, scoped, tag = 'scoped memory for tpu_custom_call.1']
    #allocation7 [shape = 'u8[4096]{0}', space=vmem, size = 0x1000, scoped, tag = 'output window, operand 0, single buffered']
    %7 = vsyncpa [#allocation3], 0
    %8 = vsyncpa [#allocation6], 0
    %9 = vsyncpa [#allocation4], 0
    // Predicated region
    $region2: #{tpu_custom_call.1} parent=1 // pred_check
      _
    $region3: #{tpu_custom_call.1} parent=1 // pred_check_branch
      %11 = sbr.rel (0) target = $region5
    $region4: #{tpu_custom_call.1} parent=1 // pred_region
      %s13 = ssub.s32 640, 640
      %14 = vsyncadd [#allocation3], %s13
      %s15 = sshll.u32 [#allocation2], 4
      %s16 = int_to_ptr.vmem [resolvable:$true] %s15
      %21 = dma.hbm_to_vmem [thread:$0]  %s0, 640, %s16, [#allocation3], 128, 128, 8
    $region5: #{tpu_custom_call.1} parent=1 // pred_fallthru
      _
    // Predicated region
    $region6: #{tpu_custom_call.1} parent=1 // pred_check
      _
    $region7: #{tpu_custom_call.1} parent=1 // pred_check_branch
      %23 = sbr.rel (0) target = $region9
    $region8: #{tpu_custom_call.1} parent=1 // pred_region
      %s25 = ssub.s32 128, 128
      %26 = vsyncadd [#allocation6], %s25
      %s28 = sshll.u32 [#allocation5], 4
      %s29 = int_to_ptr.vmem [resolvable:$true] %s28
      %31 = dma.hbm_to_vmem [thread:$0]  %s1, 128, %s29, [#allocation6]
    $region9: #{tpu_custom_call.1} parent=1 // pred_fallthru
      _
    // Predicated region
    $region10: #{tpu_custom_call.1} parent=1 // pred_check
      _
    $region11: #{tpu_custom_call.1} parent=1 // pred_check_branch
      %33 = sbr.rel (0) target = $region13
    $region12: #{tpu_custom_call.1} parent=1 // pred_region
      %34 = dma.done [#allocation3], 640
    $region13: #{tpu_custom_call.1} parent=1 // pred_fallthru
      _
    // Predicated region
    $region14: #{tpu_custom_call.1} parent=1 // pred_check
      _
    $region15: #{tpu_custom_call.1} parent=1 // pred_check_branch
      %36 = sbr.rel (0) target = $region17
    $region16: #{tpu_custom_call.1} parent=1 // pred_region
      %37 = dma.done [#allocation6], 128
    $region17: #{tpu_custom_call.1} parent=1 // pred_fallthru
      _
    %v38 = vld [vmem:[#allocation5] sm:$0xff]
    %v39 = vld [vmem:[#allocation2] sm:$0xff]
    %s40 = scalar_lea.vmem [#allocation2], 8
    %v41 = vld [vmem:[%s40] sm:$0xff]
    %s42 = scalar_lea.vmem [#allocation2], 16
    %v43 = vld [vmem:[%s42] sm:$0xff]
    %s44 = scalar_lea.vmem [#allocation2], 24
    %v45 = vld [vmem:[%s44] sm:$0xff]
    %s46 = scalar_lea.vmem [#allocation2], 32
    %v47 = vld [vmem:[%s46] sm:$0xff]
    %v48 = vmax.f32 %v39, %v41
    %v49 = vmax.f32 %v48, %v43
    %v50 = vmax.f32 %v49, %v45
    %v51 = vmax.f32 %v50, %v47
    %v52 = vsub.f32 %v39, %v51
    %v53 = vmul.f32 %v52, 1.442695
    %v54 = vpow.pop %v53
    %v55 = vadd.f32 %v54, 0.0
    %vm56 = vcmp.eq.s32.totalorder %v38, 0
    %v57 = vsel %vm56, %v52, 0.0
    %v58 = vsel %vm56, %v54, 0.0
    %v59 = vsel %vm56, 0.75, 0.0
    %v60 = vsub.f32 %v41, %v51
    %v61 = vmul.f32 %v60, 1.442695
    %v62 = vpow.pop %v61
    %v63 = vadd.f32 %v55, %v62
    %vm64 = vcmp.eq.s32.totalorder %v38, 1
    %v65 = vsel %vm64, %v60, %v57
    %v66 = vsel %vm64, %v62, %v58
    %v67 = vsel %vm64, 0.25, %v59
    %v68 = vsub.f32 %v43, %v51
    %v69 = vmul.f32 %v68, 1.442695
    %v70 = vpow.pop %v69
    %v71 = vadd.f32 %v63, %v70
    %vm72 = vcmp.eq.s32.totalorder %v38, 2
    %v73 = vsel %vm72, %v68, %v65
    %v74 = vsel %vm72, %v70, %v66
    %v75 = vsel %vm72, 0.25, %v67
    %v76 = vsub.f32 %v45, %v51
    %v77 = vmul.f32 %v76, 1.442695
    %v78 = vpow.pop %v77
    %v79 = vadd.f32 %v71, %v78
    %vm80 = vcmp.eq.s32.totalorder %v38, 3
    %v81 = vsel %vm80, %v76, %v73
    %v82 = vsel %vm80, %v78, %v74
    %v83 = vsel %vm80, 0.25, %v75
    %v84 = vsub.f32 %v47, %v51
    %v85 = vmul.f32 %v84, 1.442695
    %v86 = vpow.pop %v85
    %v87 = vadd.f32 %v79, %v86
    %vm88 = vcmp.eq.s32.totalorder %v38, 4
    %v89 = vsel %vm88, %v84, %v81
    %v90 = vsel %vm88, %v86, %v82
    %v91 = vsel %vm88, 0.25, %v83
    %v92 = vlog2.pop %v87
    %v93 = vmul.f32 %v92, 0.6931472
    %v94 = vsub.f32 %v89, %v93
    %v95 = vrcp.pop %v87
    %v96 = vmul.f32 %v90, %v95
    %v97 = vsub.f32 1.0, %v96
    %v98 = vmul.f32 %v97, %v97
    %v99 = vsub.f32 0.0, %v91
    %v100 = vmul.f32 %v99, %v98
    %v101 = vmul.f32 %v100, %v94
    %s102 = smul.u32 0, 1024
    %v103 = vlaneseq
    %v104 = vshrl.u32 %v103, 7
    %v105 = vmul.u32 %v104, 128
    %v106 = vstv %s102
    %v107 = vadd.s32 %v106, %v105
    %v108 = vlaneseq
    %v109 = vand.u32 %v108, 127
    %v110 = vadd.s32 %v107, %v109
    %vm111 = vcmp.lt.s32.totalorder %v110, 12
    %v112 = vsel %vm111, %v101, 0.0
    %v113 = vadd.f32 %v112, 0.0
    %114 = vst [vmem:[#allocation7] sm:$0xff] %v113
    // Predicated region
    $region18: #{tpu_custom_call.1} parent=1 // pred_check
      _
    $region19: #{tpu_custom_call.1} parent=1 // pred_check_branch
      %116 = sbr.rel (0) target = $region21
    $region20: #{tpu_custom_call.1} parent=1 // pred_region
      %s118 = ssub.s32 128, 128
      %119 = vsyncadd [#allocation4], %s118
      %s121 = sshll.u32 [#allocation7], 4
      %s122 = int_to_ptr.vmem [resolvable:$true] %s121
      %124 = dma.vmem_to_hbm [thread:$0]  %s122, 128, %s2, [#allocation4]
    $region21: #{tpu_custom_call.1} parent=1 // pred_fallthru
      _
    // Predicated region
    $region22: #{tpu_custom_call.1} parent=1 // pred_check
      _
    $region23: #{tpu_custom_call.1} parent=1 // pred_check_branch
      %126 = sbr.rel (0) target = $region25
    $region24: #{tpu_custom_call.1} parent=1 // pred_region
      %127 = dma.done [#allocation4], 128
    $region25: #{tpu_custom_call.1} parent=1 // pred_fallthru
      _
    %128 = vsyncpa [#allocation3], 1
    %129 = vsyncpa [#allocation6], 1
    %130 = vsyncpa [#allocation4], 1

</llo_original>
